<compile_context>
chip_gen: v7x
topology: tpu7x:2x2x1
jax: 0.10.0
libtpu: 0.0.40
codegen_flags: <defaults>
</compile_context>

<pallas_src>
import functools

import jax
import jax.numpy as jnp
from jax import lax
from jax.experimental import pallas as pl
from jax.experimental.pallas import tpu as pltpu


def _round_up(x, m):
    return (x + m - 1) // m * m


def _patch_embed_kernel(x_ref, w_ref, p_ref, o_ref, *, eps, e_valid):
    # x_ref: (tm, K)      tile of flattened patches (K = C*P*P)
    # w_ref: (K, E_pad)   flattened conv weight (transposed, E zero-padded to 128n)
    # p_ref: (8, E_pad)   packed params: row 0 = conv bias, 1 = LN gamma, 2 = LN beta
    # o_ref: (tm, E_pad)
    x = x_ref[...]
    w = w_ref[...]

    # Patch projection (Conv2d with stride == kernel) -> MXU matmul, f32 accumulation.
    h = jnp.dot(x, w, preferred_element_type=jnp.float32)

    p = p_ref[...].astype(jnp.float32)
    bias = p[0:1, :]
    gamma = p[1:2, :]
    beta = p[2:3, :]
    h = h + bias                       # padded E columns stay exactly 0

    e_pad = h.shape[-1]
    if e_valid == e_pad:
        # No embedding padding: plain LayerNorm over the last dim.
        mu = jnp.mean(h, axis=-1, keepdims=True)
        d = h - mu
        var = jnp.mean(d * d, axis=-1, keepdims=True)
    else:
        # E was padded to a multiple of 128 for lane-dense stores; compute the
        # statistics over the true embed_dim only (lane mask on the VPU).
        mask = lax.broadcasted_iota(jnp.int32, h.shape, 1) < e_valid
        hm = jnp.where(mask, h, 0.0)
        mu = jnp.sum(hm, axis=-1, keepdims=True) * (1.0 / e_valid)
        d = jnp.where(mask, h - mu, 0.0)
        var = jnp.sum(d * d, axis=-1, keepdims=True) * (1.0 / e_valid)

    inv = lax.rsqrt(var + eps)
    out = (h - mu) * inv * gamma + beta   # padded cols: gamma=beta=0 -> 0 (sliced off)
    o_ref[...] = out.astype(o_ref.dtype)


@functools.partial(
    jax.jit,
    static_argnames=("patch_size", "tm", "eps", "compute_dtype", "out_dtype",
                     "min_grid_steps", "vmem_budget_bytes"))
def _patch_embed_2d(x, proj_w, proj_b, ln_g, ln_b, *, patch_size, tm, eps,
                    compute_dtype, out_dtype, min_grid_steps, vmem_budget_bytes):
    """Returns the (B, N, E) token tensor."""
    B, C, H, W = x.shape
    P = patch_size
    Hp, Wp = H // P, W // P
    N = Hp * Wp
    E = proj_w.shape[0]
    K = C * P * P
    M = B * N

    in_dtype = jnp.dtype(compute_dtype) if compute_dtype is not None else x.dtype
    o_dtype = jnp.dtype(out_dtype) if out_dtype is not None else x.dtype
    in_item = jnp.dtype(in_dtype).itemsize
    out_item = jnp.dtype(o_dtype).itemsize

    # --- Layout plumbing (XLA side) -------------------------------------------------
    # Non-overlapping P x P patches, each row flattened in (c, dh, dw) order -- exactly
    # the Conv2d reduction order.  allow_input_fusion below lets XLA fuse this
    # transpose/reshape into the pallas_call operand DMA (no extra HBM round trip).
    patches = x.reshape(B, C, Hp, P, Wp, P).transpose(0, 2, 4, 1, 3, 5).reshape(M, K)
    patches = patches.astype(in_dtype)

    # Pad embed_dim up to a multiple of 128 so output stores are lane-dense (unmasked).
    E_pad = _round_up(E, 128)
    w2d = proj_w.reshape(E, K).T.astype(in_dtype)          # (K, E)
    if E_pad != E:
        w2d = jnp.pad(w2d, ((0, 0), (0, E_pad - E)))
    # Pack bias / gamma / beta into a single (8, E_pad) operand (rows 0..2 used).
    params = jnp.zeros((8, E_pad), jnp.float32)
    params = params.at[0, :E].set(proj_b.astype(jnp.float32))
    params = params.at[1, :E].set(ln_g.astype(jnp.float32))
    params = params.at[2, :E].set(ln_b.astype(jnp.float32))

    # --- Row-tile selection -----------------------------------------------------------
    M8 = _round_up(M, 8)
    tm_eff = min(tm, M8)

    # VMEM cap: double-buffered in/out tiles + double-buffered resident weight/params.
    resident = 2 * K * E_pad * in_item + 2 * 8 * E_pad * 4
    per_row = 2 * K * in_item + 2 * E_pad * out_item
    tm_vmem = max(8, ((vmem_budget_bytes - resident) // per_row) // 8 * 8)
    tm_eff = min(tm_eff, tm_vmem)

    # Guarantee >= min_grid_steps grid steps when M allows it (both v7x TCs get work).
    if M8 >= min_grid_steps * 8:
        tm_eff = min(tm_eff, max(8, (M8 // min_grid_steps) // 8 * 8))
    tm_eff = max(tm_eff, 8)

    M_pad = _round_up(M, tm_eff)
    if M_pad != M:
        # Only hit when B*N is not a multiple of the (clamped) tile.
        patches = jnp.pad(patches, ((0, M_pad - M), (0, 0)))

    grid = (M_pad // tm_eff,)

    # Scoped-VMEM limit from the actual working set (+50% headroom), clamped to 64 MiB.
    work = 2 * tm_eff * K * in_item + resident + 2 * tm_eff * E_pad * out_item
    vmem_limit = int(min(max(work + work // 2 + (4 << 20), 32 << 20), 64 << 20))

    # Dtype-aware advisory cost for XLA's scheduler.
    cost = pl.CostEstimate(
        flops=2 * M_pad * K * E_pad + 10 * M_pad * E_pad,
        transcendentals=M_pad,                 # one rsqrt per row
        bytes_accessed=(M_pad * K * in_item + K * E_pad * in_item
                        + 8 * E_pad * 4 + M_pad * E_pad * out_item))

    out2d = pl.pallas_call(
        functools.partial(_patch_embed_kernel, eps=eps, e_valid=E),
        out_shape=jax.ShapeDtypeStruct((M_pad, E_pad), o_dtype),
        grid_spec=pltpu.PrefetchScalarGridSpec(
            num_scalar_prefetch=0,
            grid=grid,
            in_specs=[
                pl.BlockSpec((tm_eff, K), lambda i: (i, 0)),    # patch rows (tiled)
                pl.BlockSpec((K, E_pad), lambda i: (0, 0)),     # conv weight (resident)
                pl.BlockSpec((8, E_pad), lambda i: (0, 0)),     # packed bias/gamma/beta
            ],
            out_specs=pl.BlockSpec((tm_eff, E_pad), lambda i: (i, 0)),
        ),
        compiler_params=pltpu.CompilerParams(
            dimension_semantics=("parallel",),
            allow_input_fusion=[True, False, False],
            vmem_limit_bytes=vmem_limit),
        cost_estimate=cost,
    )(patches, w2d, params)

    out2d = out2d[:M, :E]
    return out2d.reshape(B, N, E)


def patch_embed_forward(x, proj_w, proj_b, ln_g, ln_b, *, patch_size, tm=1024,
                        eps=1e-5, compute_dtype=None, out_dtype=None,
                        min_grid_steps=2, vmem_budget_bytes=40 << 20):
    """Matches PatchEmbed.forward: returns (tokens (B, N, E), (H//P, W//P)).

    compute_dtype=jnp.bfloat16 halves HBM read bytes for large PVT stages (MXU
    accumulation and LayerNorm math stay f32 inside the kernel).
    """
    _, _, H, W = x.shape
    tokens = _patch_embed_2d(x, proj_w, proj_b, ln_g, ln_b,
                             patch_size=patch_size, tm=tm, eps=eps,
                             compute_dtype=compute_dtype, out_dtype=out_dtype,
                             min_grid_steps=min_grid_steps,
                             vmem_budget_bytes=vmem_budget_bytes)
    return tokens, (H // patch_size, W // patch_size)


def patch_embed_reference(x, proj_w, proj_b, ln_g, ln_b, *, patch_size, eps=1e-5):
    """Pure-JAX reference of the torch forward (Conv2d + LayerNorm)."""
    P = patch_size
    y = lax.conv_general_dilated(
        x, proj_w, window_strides=(P, P), padding="VALID",
        dimension_numbers=("NCHW", "OIHW", "NCHW"))
    y = y + proj_b.reshape(1, -1, 1, 1)
    B, E, Hp, Wp = y.shape
    y = y.reshape(B, E, Hp * Wp).transpose(0, 2, 1)          # (B, N, E)
    mu = jnp.mean(y, axis=-1, keepdims=True)
    var = jnp.mean((y - mu) ** 2, axis=-1, keepdims=True)
    y = (y - mu) / jnp.sqrt(var + eps) * ln_g + ln_b
    return y, (Hp, Wp)


if __name__ == "__main__":
    key = jax.random.PRNGKey(0)
    kx, kw, kb, kg, kbeta = jax.random.split(key, 5)

    B, C, H, W = 2, 3, 16, 16
    patch_size = 4
    K = C * patch_size * patch_size
    x = jax.random.normal(kx, (B, C, H, W), jnp.float32)

    # embed_dim=128: lane-dense output as-is.  embed_dim=64: real PVT stage-1 width,
    # exercises the E->128 padding + masked-LayerNorm path.
    for embed_dim in (128, 64):
        proj_w = (jax.random.normal(kw, (embed_dim, C, patch_size, patch_size),
                                    jnp.float32) * (1.0 / jnp.sqrt(float(K))))
        proj_b = jax.random.normal(kb, (embed_dim,), jnp.float32) * 0.02
        ln_g = 1.0 + 0.1 * jax.random.normal(kg, (embed_dim,), jnp.float32)
        ln_b = 0.1 * jax.random.normal(kbeta, (embed_dim,), jnp.float32)

        out, (Hp, Wp) = patch_embed_forward(x, proj_w, proj_b, ln_g, ln_b,
                                            patch_size=patch_size)
        out = jax.block_until_ready(out)

        ref, (Hr, Wr) = patch_embed_reference(x, proj_w, proj_b, ln_g, ln_b,
                                              patch_size=patch_size)

        N = (H // patch_size) * (W // patch_size)
        assert out.shape == (B, N, embed_dim), out.shape
        assert (Hp, Wp) == (Hr, Wr) == (H // patch_size, W // patch_size)
        err = float(jnp.max(jnp.abs(out - ref)))
        assert err < 2e-4, err

    print("KERNEL_OK")
</pallas_src>

<mosaic_0001>
module attributes {stable_mosaic.version = 11 : i64} {
  func.func @_patch_embed_kernel(%arg0: i32, %arg1: memref<16x48xf32, #tpu.memory_space<vmem>>, %arg2: memref<48x128xf32, #tpu.memory_space<vmem>>, %arg3: memref<8x128xf32, #tpu.memory_space<vmem>>, %arg4: memref<16x128xf32, #tpu.memory_space<vmem>>) attributes {dimension_semantics = [#tpu.dimension_semantics<parallel>], iteration_bounds = array<i64: 2>, scalar_prefetch = 0 : i64, scratch_operands = 0 : i64, tpu.core_type = #tpu.core_type<tc>, window_params = [{transform_indices = @transform_0, window_bounds = array<i64: 16, 48>}, {pipeline_mode = #tpu.pipeline_mode<synchronous>, transform_indices = @transform_1, window_bounds = array<i64: 48, 128>}, {pipeline_mode = #tpu.pipeline_mode<synchronous>, transform_indices = @transform_2, window_bounds = array<i64: 8, 128>}, {transform_indices = @transform_3, window_bounds = array<i64: 16, 128>}]} {
    %c0 = arith.constant 0 : index
    %c0_0 = arith.constant 0 : index
    %0 = vector.load %arg1[%c0, %c0_0] : memref<16x48xf32, #tpu.memory_space<vmem>>, vector<16x48xf32>
    %c0_1 = arith.constant 0 : index
    %c0_2 = arith.constant 0 : index
    %1 = vector.load %arg2[%c0_1, %c0_2] : memref<48x128xf32, #tpu.memory_space<vmem>>, vector<48x128xf32>
    %cst = arith.constant dense<0.000000e+00> : vector<16x128xf32>
    %2 = tpu.matmul %0, %1, %cst {dimension_numbers = #tpu.dot_dimension_numbers<[1], [0], [0], [1], [0, 0, 1, 1], [], []>} : vector<16x48xf32>, vector<48x128xf32>, vector<16x128xf32> -> vector<16x128xf32>
    %c0_3 = arith.constant 0 : index
    %c0_4 = arith.constant 0 : index
    %3 = vector.load %arg3[%c0_3, %c0_4] : memref<8x128xf32, #tpu.memory_space<vmem>>, vector<8x128xf32>
    %4 = vector.extract_strided_slice %3 {offsets = [0, 0], sizes = [1, 128], strides = [1, 1]} : vector<8x128xf32> to vector<1x128xf32>
    %5 = vector.extract_strided_slice %3 {offsets = [1, 0], sizes = [1, 128], strides = [1, 1]} : vector<8x128xf32> to vector<1x128xf32>
    %6 = vector.extract_strided_slice %3 {offsets = [2, 0], sizes = [1, 128], strides = [1, 1]} : vector<8x128xf32> to vector<1x128xf32>
    %7 = vector.broadcast %4 : vector<1x128xf32> to vector<16x128xf32>
    %8 = arith.addf %2, %7 : vector<16x128xf32>
    %cst_5 = arith.constant dense<0.000000e+00> : vector<16xf32>
    %9 = vector.multi_reduction <add>, %8, %cst_5 [1] : vector<16x128xf32> to vector<16xf32>
    %10 = vector.shape_cast %9 : vector<16xf32> to vector<16x1xf32>
    %cst_6 = arith.constant 1.280000e+02 : f32
    %11 = vector.broadcast %cst_6 : f32 to vector<16x1xf32>
    %12 = arith.divf %10, %11 : vector<16x1xf32>
    %13 = vector.broadcast %12 : vector<16x1xf32> to vector<16x128xf32>
    %14 = arith.subf %8, %13 : vector<16x128xf32>
    %15 = arith.mulf %14, %14 : vector<16x128xf32>
    %cst_7 = arith.constant dense<0.000000e+00> : vector<16xf32>
    %16 = vector.multi_reduction <add>, %15, %cst_7 [1] : vector<16x128xf32> to vector<16xf32>
    %17 = vector.shape_cast %16 : vector<16xf32> to vector<16x1xf32>
    %cst_8 = arith.constant 1.280000e+02 : f32
    %18 = vector.broadcast %cst_8 : f32 to vector<16x1xf32>
    %19 = arith.divf %17, %18 : vector<16x1xf32>
    %cst_9 = arith.constant 9.99999974E-6 : f32
    %20 = vector.broadcast %cst_9 : f32 to vector<16x1xf32>
    %21 = arith.addf %19, %20 : vector<16x1xf32>
    %22 = math.rsqrt %21 : vector<16x1xf32>
    %23 = vector.broadcast %12 : vector<16x1xf32> to vector<16x128xf32>
    %24 = arith.subf %8, %23 : vector<16x128xf32>
    %25 = vector.broadcast %22 : vector<16x1xf32> to vector<16x128xf32>
    %26 = arith.mulf %24, %25 : vector<16x128xf32>
    %27 = vector.broadcast %5 : vector<1x128xf32> to vector<16x128xf32>
    %28 = arith.mulf %26, %27 : vector<16x128xf32>
    %29 = vector.broadcast %6 : vector<1x128xf32> to vector<16x128xf32>
    %30 = arith.addf %28, %29 : vector<16x128xf32>
    %c0_10 = arith.constant 0 : index
    %c0_11 = arith.constant 0 : index
    %31 = vector.load %arg4[%c0_10, %c0_11] : memref<16x128xf32, #tpu.memory_space<vmem>>, vector<16x128xf32>
    tpu.vector_store %arg4[%c0_10, %c0_11], %30 {strides = array<i32>} : memref<16x128xf32, #tpu.memory_space<vmem>>, vector<16x128xf32>,
    return
  }
  func.func @transform_0(%arg0: i32) -> (i32, i32) {
    %c0_i32 = arith.constant 0 : i32
    %c0_i32_0 = arith.constant 0 : i32
    return %arg0, %c0_i32 : i32, i32
  }
  func.func @transform_1(%arg0: i32) -> (i32, i32) {
    %c0_i32 = arith.constant 0 : i32
    %c0_i32_0 = arith.constant 0 : i32
    %c0_i32_1 = arith.constant 0 : i32
    return %c0_i32, %c0_i32_0 : i32, i32
  }
  func.func @transform_2(%arg0: i32) -> (i32, i32) {
    %c0_i32 = arith.constant 0 : i32
    %c0_i32_0 = arith.constant 0 : i32
    %c0_i32_1 = arith.constant 0 : i32
    return %c0_i32, %c0_i32_0 : i32, i32
  }
  func.func @transform_3(%arg0: i32) -> (i32, i32) {
    %c0_i32 = arith.constant 0 : i32
    %c0_i32_0 = arith.constant 0 : i32
    return %arg0, %c0_i32 : i32, i32
  }
}

</mosaic_0001>

<llo_original>
// kernel: _patch_embed_2d.1
$region0: #{_patch_embed_2d.1}
  #allocation0 [shape = 'u32[]', space=smem, size = 0x4, offset = 0x4, fixed_abs, tag = 'smem constant byte address 0x4 - core index']
  #allocation1 [shape = 'u32[144,128]{1,0:T(1,128)}', space=vmem, size = 0x12000, scoped, tag = 'internal scratch']
  %s0 = inlined_call_operand.vmem [shape: f32[32,48], index: 0, kind: input, shape index: {}]
  %s1 = inlined_call_operand.vmem [shape: f32[48,128], index: 1, kind: input, shape index: {}]
  %s2 = inlined_call_operand.vmem [shape: f32[8,128], index: 2, kind: input, shape index: {}]
  %s3 = inlined_call_operand.hbm [shape: f32[32,128], index: 3, kind: output, shape index: {}]
  %s4 = sld [smem:[#allocation0]]
  $region45: #{_patch_embed_2d.1} parent=0
    _
  %s6 = ssub.s32 1, %s4
  %s7 = scalar_select 0, %s6, %s4
  $region1: #{_patch_embed_2d.1} parent=0
    #allocation2 [shape = 'u8[16384]{0}', space=vmem, size = 0x4000, scoped, tag = 'output window, operand 0']
    #allocation3 [shape = 's32[2]{0}', space=sflag, size = 0x8, scoped, tag = 'scoped memory for _patch_embed_2d.1']
    %8 = vsyncpa [#allocation3], 0
    %s9 = scalar_lea.sflag [#allocation3], 1
    %10 = vsyncpa %s9, 0
    loop: start=0, step=1, limit=4
    $region2: #{_patch_embed_2d.1} parent=1 // loop_pre_header
      _
    $region3: #{_patch_embed_2d.1} parent=1 // loop_header
      %s12 = sphi 0, %s16
      %p13 = scmp.ge.s32.totalorder %s12, 4
      %s22 = sphi 0, %s24
      %s25 = sphi 0, %s22
      %s26 = sphi 0, %s25
      %s42 = sphi 0, %s26
      %s46 = sphi 0, %s46
      %s48 = sphi 0, %s46
      %s49 = sphi 0, %s48
      %s63 = sphi 0, %s49
      %s67 = sphi 0, %s67
      %s69 = sphi 0, %s67
      %s70 = sphi 0, %s69
      %s84 = sphi 0, %s70
      %s90 = sphi 0, %s92
      %s93 = sphi 0, %s90
      %s94 = sphi 0, %s93
      %s110 = sphi 0, %s94
    $region4: #{_patch_embed_2d.1} parent=1 // loop_header_branch
      %15 = sbr.rel (%p13) target = $region8
    $region5: #{_patch_embed_2d.1} parent=1 // loop_body
      %s17 = ssub.s32 %s12, 1
      %s18 = ssub.s32 %s12, 2
      %s19 = sadd.s32 %s12, 1
      %s20 = ssub.s32 %s12, %s19
      %p21 = scmp.eq.s32.totalorder %s20, 0
      %s23 = sadd.s32 %s22, 1
      %s24 = scalar_select %p21, %s22, %s23
      %p27 = pneg %p21
      %p28 = scmp.eq.s32.totalorder %s12, 1
      %p29 = por %p27, %p28
      %p30 = scmp.ne.s32.totalorder %s22, %s25
      %p31 = scmp.eq.s32.totalorder %s12, 0
      %p32 = por %p30, %p31
      %p33 = scmp.ne.s32.totalorder %s22, %s25
      %p34 = scmp.eq.s32.totalorder %s17, 1
      %p35 = por %p33, %p34
      %p36 = scmp.ne.s32.totalorder %s25, %s26
      %p37 = scmp.eq.s32.totalorder %s17, 0
      %p38 = por %p36, %p37
      %p39 = scmp.ne.s32.totalorder %s25, %s26
      %p40 = scmp.eq.s32.totalorder %s18, 1
      %p41 = por %p39, %p40
      %p43 = scmp.ne.s32.totalorder %s26, %s42
      %p44 = scmp.eq.s32.totalorder %s18, 0
      %p45 = por %p43, %p44
      %s47 = sadd.s32 %s46, 1
      %p50 = scmp.eq.s32.totalorder %s12, 1
      %p51 = scmp.ne.s32.totalorder %s46, %s48
      %p52 = scmp.eq.s32.totalorder %s12, 0
      %p53 = por %p51, %p52
      %p54 = scmp.ne.s32.totalorder %s46, %s48
      %p55 = scmp.eq.s32.totalorder %s17, 1
      %p56 = por %p54, %p55
      %p57 = scmp.ne.s32.totalorder %s48, %s49
      %p58 = scmp.eq.s32.totalorder %s17, 0
      %p59 = por %p57, %p58
      %p60 = scmp.ne.s32.totalorder %s48, %s49
      %p61 = scmp.eq.s32.totalorder %s18, 1
      %p62 = por %p60, %p61
      %p64 = scmp.ne.s32.totalorder %s49, %s63
      %p65 = scmp.eq.s32.totalorder %s18, 0
      %p66 = por %p64, %p65
      %s68 = sadd.s32 %s67, 1
      %p71 = scmp.eq.s32.totalorder %s12, 1
      %p72 = scmp.ne.s32.totalorder %s67, %s69
      %p73 = scmp.eq.s32.totalorder %s12, 0
      %p74 = por %p72, %p73
      %p75 = scmp.ne.s32.totalorder %s67, %s69
      %p76 = scmp.eq.s32.totalorder %s17, 1
      %p77 = por %p75, %p76
      %p78 = scmp.ne.s32.totalorder %s69, %s70
      %p79 = scmp.eq.s32.totalorder %s17, 0
      %p80 = por %p78, %p79
      %p81 = scmp.ne.s32.totalorder %s69, %s70
      %p82 = scmp.eq.s32.totalorder %s18, 1
      %p83 = por %p81, %p82
      %p85 = scmp.ne.s32.totalorder %s70, %s84
      %p86 = scmp.eq.s32.totalorder %s18, 0
      %p87 = por %p85, %p86
      %s88 = ssub.s32 %s12, %s19
      %p89 = scmp.eq.s32.totalorder %s88, 0
      %s91 = sadd.s32 %s90, 1
      %s92 = scalar_select %p89, %s90, %s91
      %p95 = pneg %p89
      %p96 = scmp.eq.s32.totalorder %s12, 1
      %p97 = por %p95, %p96
      %p98 = scmp.ne.s32.totalorder %s90, %s93
      %p99 = scmp.eq.s32.totalorder %s12, 0
      %p100 = por %p98, %p99
      %p101 = scmp.ne.s32.totalorder %s90, %s93
      %p102 = scmp.eq.s32.totalorder %s17, 1
      %p103 = por %p101, %p102
      %p104 = scmp.ne.s32.totalorder %s93, %s94
      %p105 = scmp.eq.s32.totalorder %s17, 0
      %p106 = por %p104, %p105
      %p107 = scmp.ne.s32.totalorder %s93, %s94
      %p108 = scmp.eq.s32.totalorder %s18, 1
      %p109 = por %p107, %p108
      %p111 = scmp.ne.s32.totalorder %s94, %s110
      %p112 = scmp.eq.s32.totalorder %s18, 0
      %p113 = por %p111, %p112
      %p114 = scmp.le.s32.totalorder 1, %s12
      %p115 = scmp.lt.s32.totalorder %s12, 3
      %p116 = pnand %p114, %p115
      %p117 = pneg %p116
      // Predicated region
      $region9: #{_patch_embed_2d.1} parent=5 // pred_check
        _
      $region10: #{_patch_embed_2d.1} parent=5 // pred_check_branch
        %119 = sbr.rel (%p116) target = $region12
      $region11: #{_patch_embed_2d.1} parent=5 // pred_region
        %s120 = ssub.s32 %s12, 1
        // Predicated region
        $region13: #{_patch_embed_2d.1} parent=11 // pred_check
          %p121 = pneg %p59
        $region14: #{_patch_embed_2d.1} parent=11 // pred_check_branch
          %123 = sbr.rel (%p121) target = $region16
        $region15: #{_patch_embed_2d.1} parent=11 // pred_region
          _
        $region16: #{_patch_embed_2d.1} parent=11 // pred_fallthru
          _
        // Predicated region
        $region17: #{_patch_embed_2d.1} parent=11 // pred_check
          %p124 = pneg %p80
        $region18: #{_patch_embed_2d.1} parent=11 // pred_check_branch
          %126 = sbr.rel (%p124) target = $region20
        $region19: #{_patch_embed_2d.1} parent=11 // pred_region
          _
        $region20: #{_patch_embed_2d.1} parent=11 // pred_fallthru
          _
      $region12: #{_patch_embed_2d.1} parent=5 // pred_fallthru
        _
      %p127 = scmp.lt.s32.totalorder %s12, 2
      // Predicated region
      $region21: #{_patch_embed_2d.1} parent=5 // pred_check
        %p128 = pneg %p127
      $region22: #{_patch_embed_2d.1} parent=5 // pred_check_branch
        %130 = sbr.rel (%p128) target = $region24
      $region23: #{_patch_embed_2d.1} parent=5 // pred_region
        // Predicated region
        $region25: #{_patch_embed_2d.1} parent=23 // pred_check
          %p131 = pneg %p32
        $region26: #{_patch_embed_2d.1} parent=23 // pred_check_branch
          %133 = sbr.rel (%p131) target = $region28
        $region27: #{_patch_embed_2d.1} parent=23 // pred_region
          %s134 = smul.u32 2, %s12
          %p135 = scmp.lt.s32.totalorder %s134, 3
          %s136 = scalar_select %p135, %s134, 3
          %s137 = smul.addr %s136, 8
          %s138 = scalar_lea.vmem %s0, %s137
          %s139 = smul.u32 2, %s12
        $region28: #{_patch_embed_2d.1} parent=23 // pred_fallthru
          _
      $region24: #{_patch_embed_2d.1} parent=5 // pred_fallthru
        _
      %p140 = scmp.le.s32.totalorder 1, %s12
      %p141 = scmp.lt.s32.totalorder %s12, 3
      %p142 = pnand %p140, %p141
      %p143 = pneg %p142
      // Predicated region
      $region29: #{_patch_embed_2d.1} parent=5 // pred_check
        _
      $region30: #{_patch_embed_2d.1} parent=5 // pred_check_branch
        %145 = sbr.rel (%p142) target = $region32
      $region31: #{_patch_embed_2d.1} parent=5 // pred_region
        %s146 = ssub.s32 %s12, 1
        %s147 = smul.u32 2, %s17
        %p148 = scmp.lt.s32.totalorder %s147, 3
        %s149 = scalar_select %p148, %s147, 3
        %s150 = smul.addr %s149, 8
        %s151 = scalar_lea.vmem %s0, %s150
        %p152 = pneg %p38
        %p153 = pneg %p35
        %p154 = pneg %p59
        %p155 = pneg %p56
        %p156 = pneg %p80
        %p157 = pneg %p77
        %p158 = pneg %p106
        %p159 = pneg %p103
        %s160 = sand.u32 %s93, 1
        %s161 = scalar_lea.sflag [#allocation3], %s160
        %s162 = sand.u32 %s93, 1
        %s163 = smul.addr %s162, 16
        %s164 = scalar_lea.vmem [#allocation2], %s163
        %s165 = smul.u32 2, %s17
        %p166 = scmp.lt.s32.totalorder %s165, 3
        %s167 = scalar_select %p166, %s165, 3
        %s168 = smul.addr %s167, 8
        %s169 = scalar_lea.vmem %s0, %s168
        %s170 = smul.u32 2, %s17
        %s171 = smul.u32 2, %s17
        %v172 = vld [vmem:[%s169] sm:$0xff]
        %v173 = vld [vmem:[%s169 + $0x8] sm:$0xff]
        %v174 = vld [vmem:[%s1] sm:$0xff]
        %v175 = vld [vmem:[%s1 + $0x8] sm:$0xff]
        %v176 = vld [vmem:[%s1 + $0x10] sm:$0xff]
        %v177 = vld [vmem:[%s1 + $0x18] sm:$0xff]
        %v178 = vld [vmem:[%s1 + $0x20] sm:$0xff]
        %v179 = vld [vmem:[%s1 + $0x28] sm:$0xff]
        %v180 = vld [vmem:[%s2] sm:$0xff]
        %v181 = vlaneseq
        %v182 = vshrl.u32 %v181, 7
        %v183 = vsub.s32 0, %v182
        %v184 = vrot.slane %v180, %v183
        %vm185 = vcmask 392192
        %v187 = vsel %vm185, %v172, 0
        %v190 = vsel %vm185, %v173, 0
        %192 = vmatprep.subr.mxu0 0.0
        %193 = vmatpush1.msra.mxu0 %v174
        %194 = vmatprep.subr.mxu0 0.0
        %195 = vmatpush1.msra.mxu0 %v175
        %196 = vmatprep.subr.mxu0 0.0
        %197 = vmatpush1.msra.mxu0 %v176
        %198 = vmatprep.subr.mxu0 0.0
        %199 = vmatpush1.msra.mxu0 %v177
        %200 = vmatprep.subr.mxu0 0.0
        %201 = vmatpush1.msra.mxu0 %v178
        %202 = vmatprep.subr.mxu0 0.0
        %203 = vmatpush1.msra.mxu0 %v179
        %204 = vmatprep.subr.mxu0 0.0
        %205 = vmatpush1.msra.mxu0 0.0
        %206 = vmatprep.subr.mxu0 0.0
        %207 = vmatpush1.msra.mxu0 0.0
        %208 = vmatprep.subr.mxu0 0.0
        %209 = vmatpush1.msra.mxu0 0.0
        %210 = vmatprep.subr.mxu0 0.0
        %211 = vmatpush1.msra.mxu0 0.0
        %212 = vmatprep.subr.mxu0 0.0
        %213 = vmatpush1.msra.mxu0 0.0
        %214 = vmatprep.subr.mxu0 0.0
        %215 = vmatpush1.msra.mxu0 0.0
        %216 = vmatprep.subr.mxu0 0.0
        %217 = vmatpush1.msra.mxu0 0.0
        %218 = vmatprep.subr.mxu0 0.0
        %219 = vmatpush1.msra.mxu0 0.0
        %220 = vmatprep.subr.mxu0 0.0
        %221 = vmatpush1.msra.mxu0 0.0
        %222 = vmatprep.subr.mxu0 0.0
        %223 = vmatpush1.msra.mxu0 0.0
        %224 = vmatprep.subr.mxu0 0.0
        %225 = vmatpush1.msra.mxu0 0.0
        %226 = vmatprep.subr.mxu0 0.0
        %227 = vmatpush1.msra.mxu0 0.0
        %228 = vmatprep.subr.mxu0 0.0
        %229 = vmatpush1.msra.mxu0 0.0
        %230 = vmatprep.subr.mxu0 0.0
        %231 = vmatpush1.msra.mxu0 0.0
        %232 = vmatprep.subr.mxu0 0.0
        %233 = vmatpush1.msra.mxu0 0.0
        %234 = vmatprep.subr.mxu0 0.0
        %235 = vmatpush1.msra.mxu0 0.0
        %236 = vmatprep.subr.mxu0 0.0
        %237 = vmatpush1.msra.mxu0 0.0
        %238 = vmatprep.subr.mxu0 0.0
        %239 = vmatpush1.msra.mxu0 0.0
        %240 = vmatprep.subr.mxu0 0.0
        %241 = vmatpush1.msra.mxu0 0.0
        %242 = vmatprep.subr.mxu0 0.0
        %243 = vmatpush1.msra.mxu0 0.0
        %244 = vmatprep.subr.mxu0 0.0
        %245 = vmatpush1.msra.mxu0 0.0
        %246 = vmatprep.subr.mxu0 0.0
        %247 = vmatpush1.msra.mxu0 0.0
        %248 = vmatprep.subr.mxu0 0.0
        %249 = vmatpush1.msra.mxu0 0.0
        %250 = vmatprep.subr.mxu0 0.0
        %251 = vmatpush1.msra.mxu0 0.0
        %252 = vmatprep.subr.mxu0 0.0
        %253 = vmatpush1.msra.mxu0 0.0
        %254 = vmatprep.subr.mxu0 0.0
        %255 = vmatpush1.msra.mxu0 0.0
        %256 = vmatprep.mubr.f32.mxu0 0.0
        %257 = vmatmul.mubr.f32.gmra.mrb[0].mxu0 %v187
        %v258 = vpop.f32.mrb[0].mxu0
        %v259 = vadd.f32 %v184, %v258
        %v260 = vpop.f32.mrb[0].mxu0
        %261 = vmatprep.mubr.f32.mxu0 0.0
        %262 = vmatmul.mubr.f32.gmra.mrb[0].mxu0 %v190
        %v263 = vpop.f32.mrb[0].mxu0
        %v264 = vadd.f32 %v184, %v263
        %v265 = vpop.f32.mrb[0].mxu0
        %266 = vdwg.mxu0
        %267 = vadd.xlane.f32.xlu0 %v259
        %v268 = vpop.xlane.xlu0 %267
        %269 = vadd.xlane.f32.xlu0 %v264
        %v270 = vpop.xlane.xlu0 %269
        %v271 = vrcp.pop 128.0
        %v272 = vmul.f32 %v268, %v271
        %v273 = vmul.f32 %v270, %v271
        %v274 = vsub.f32 %v259, %v272
        %v275 = vsub.f32 %v264, %v273
        %v276 = vmul.f32 %v274, %v274
        %v277 = vmul.f32 %v275, %v275
        %278 = vadd.xlane.f32.xlu0 %v276
        %v279 = vpop.xlane.xlu0 %278
        %280 = vadd.xlane.f32.xlu0 %v277
        %v281 = vpop.xlane.xlu0 %280
        %v282 = vmul.f32 %v279, %v271
        %v283 = vmul.f32 %v281, %v271
        %v284 = vadd.f32 %v282, 1e-05
        %v285 = vadd.f32 %v283, 1e-05
        %v286 = vrsqrt.pop %v284
        %v287 = vrsqrt.pop %v285
        %v288 = vmul.f32 %v274, %v286
        %v289 = vmul.f32 %v275, %v287
        %v290 = vlaneseq
        %v291 = vshrl.u32 %v290, 7
        %v292 = vsub.s32 1, %v291
        %v293 = vrot.slane %v180, %v292
        %v294 = vmul.f32 %v288, %v293
        %v295 = vmul.f32 %v289, %v293
        %v296 = vlaneseq
        %v297 = vshrl.u32 %v296, 7
        %v298 = vsub.s32 2, %v297
        %v299 = vrot.slane %v180, %v298
        %v300 = vadd.f32 %v294, %v299
        %v301 = vadd.f32 %v295, %v299
        %302 = vst [vmem:[%s164] sm:$0xff] %v300
        %303 = vst [vmem:[%s164 + $0x8] sm:$0xff] %v301
        %s304 = sand.u32 %s93, 1
        %s305 = scalar_lea.sflag [#allocation3], %s304
        %s306 = sand.u32 %s93, 1
        %s307 = smul.addr %s306, 16
        %s308 = scalar_lea.vmem [#allocation2], %s307
        // Predicated region
        $region33: #{_patch_embed_2d.1} parent=31 // pred_check
          %p309 = pneg %p103
        $region34: #{_patch_embed_2d.1} parent=31 // pred_check_branch
          %311 = sbr.rel (%p309) target = $region36
        $region35: #{_patch_embed_2d.1} parent=31 // pred_region
          %s312 = smul.u32 2, %s17
          %s314 = ssub.s32 256, 256
          %315 = vsyncadd %s305, %s314
          %s316 = smul.addr %s312, 128
          %s317 = scalar_lea.hbm %s3, %s316
          %s318 = sshll.u32 %s308, 4
          %s319 = int_to_ptr.vmem [resolvable:$true] %s318
          %324 = dma.vmem_to_hbm [thread:$0]  %s319, 256, %s317, %s305, 128, 128, 8
        $region36: #{_patch_embed_2d.1} parent=31 // pred_fallthru
          _
      $region32: #{_patch_embed_2d.1} parent=5 // pred_fallthru
        _
      %p325 = scmp.le.s32.totalorder 2, %s12
      // Predicated region
      $region37: #{_patch_embed_2d.1} parent=5 // pred_check
        %p326 = pneg %p325
      $region38: #{_patch_embed_2d.1} parent=5 // pred_check_branch
        %328 = sbr.rel (%p326) target = $region40
      $region39: #{_patch_embed_2d.1} parent=5 // pred_region
        %s329 = ssub.s32 %s12, 2
        // Predicated region
        $region41: #{_patch_embed_2d.1} parent=39 // pred_check
          %p330 = pneg %p109
        $region42: #{_patch_embed_2d.1} parent=39 // pred_check_branch
          %332 = sbr.rel (%p330) target = $region44
        $region43: #{_patch_embed_2d.1} parent=39 // pred_region
          %s333 = sand.u32 %s94, 1
          %s334 = scalar_lea.sflag [#allocation3], %s333
          %s335 = sand.u32 %s94, 1
          %s336 = smul.addr %s335, 16
          %s337 = scalar_lea.vmem [#allocation2], %s336
          %338 = dma.done %s334, 256
        $region44: #{_patch_embed_2d.1} parent=39 // pred_fallthru
          _
      $region40: #{_patch_embed_2d.1} parent=5 // pred_fallthru
        _
    $region6: #{_patch_embed_2d.1} parent=1 // loop_footer
      %s16 = sadd.s32 1, %s12
    $region7: #{_patch_embed_2d.1} parent=1 // loop_footer_branch
      %11 = sbr.rel target = $region3
    $region8: #{_patch_embed_2d.1} parent=1 // loop_exit
      _
    %339 = vsyncpa [#allocation3], 1
    %s340 = scalar_lea.sflag [#allocation3], 1
    %341 = vsyncpa %s340, 1

</llo_original>
